<compile_context>
chip_gen: v6e
topology: v6e:2x2x1
jax: 0.10.0
libtpu: 0.0.40
codegen_flags: <defaults>
</compile_context>

<pallas_src>
import math
from functools import partial

import jax
import jax.numpy as jnp
from jax.experimental import pallas as pl
from jax.experimental.pallas import tpu as pltpu

MXU_DTYPE = jnp.bfloat16              # MXU operands; accumulation stays fp32
VMEM_LIMIT_BYTES = 32 * 1024 * 1024   # explicit scoped-VMEM budget (safe on v5e/v6e/v7x)


def _pick_tile(dim, candidates, full_if_leq):
    """Largest candidate tile that evenly divides `dim`; whole dim if small / indivisible.
    Chosen tiles are multiples of (8, 128) or equal to the full dim -> always legal blocks."""
    if dim <= full_if_leq:
        return dim
    for t in candidates:
        if dim % t == 0:
            return t
    return dim


# ----------------------------------------------------------------------------
# Matmul (+ bias + ReLU epilogue) kernel
# ----------------------------------------------------------------------------
def _matmul_kernel(*refs, has_bias, activation):
    if has_bias:
        a_ref, b_ref, bias_ref, o_ref, acc_ref = refs
    else:
        a_ref, b_ref, o_ref, acc_ref = refs
        bias_ref = None

    @pl.when(pl.program_id(2) == 0)
    def _():
        acc_ref[...] = jnp.zeros_like(acc_ref)

    acc_ref[...] += jnp.dot(a_ref[...], b_ref[...],
                            preferred_element_type=jnp.float32)

    @pl.when(pl.program_id(2) == pl.num_programs(2) - 1)
    def _():
        out = acc_ref[...]
        if has_bias:
            out = out + bias_ref[...].astype(jnp.float32)
        if activation == "relu":                      # fused bias+ReLU epilogue (VPU)
            out = jnp.maximum(out, 0.0)
        o_ref[...] = out.astype(o_ref.dtype)


def pallas_matmul(a, b, bias=None, activation=None, out_dtype=jnp.float32):
    """a @ b (+ bias) (+ ReLU). a:(M,K) b:(K,N). bf16 MXU operands, fp32 accumulator."""
    M, K = a.shape
    K2, Nc = b.shape
    assert K == K2
    a = a.astype(MXU_DTYPE)
    b = b.astype(MXU_DTYPE)

    tm = _pick_tile(M, (512, 256, 128, 8), 512)
    tn = _pick_tile(Nc, (512, 256, 128), 512)
    tk = _pick_tile(K, (512, 256, 128), 1024)
    grid = (M // tm, Nc // tn, K // tk)

    in_specs = [pl.BlockSpec((tm, tk), lambda i, j, k: (i, k)),
                pl.BlockSpec((tk, tn), lambda i, j, k: (k, j))]
    args = [a, b]
    if bias is not None:
        in_specs.append(pl.BlockSpec((1, tn), lambda i, j, k: (0, j)))
        args.append(bias.reshape(1, Nc).astype(jnp.float32))

    cost = pl.CostEstimate(
        flops=2 * M * Nc * K, transcendentals=0,
        bytes_accessed=2 * (M * K + K * Nc) + 4 * M * Nc)

    return pl.pallas_call(
        partial(_matmul_kernel, has_bias=bias is not None, activation=activation),
        grid=grid,
        out_shape=jax.ShapeDtypeStruct((M, Nc), out_dtype),
        in_specs=in_specs,
        out_specs=pl.BlockSpec((tm, tn), lambda i, j, k: (i, j)),
        scratch_shapes=[pltpu.VMEM((tm, tn), jnp.float32)],
        compiler_params=pltpu.CompilerParams(
            dimension_semantics=("parallel", "parallel", "arbitrary"),
            vmem_limit_bytes=VMEM_LIMIT_BYTES),
        cost_estimate=cost,
    )(*args)


# ----------------------------------------------------------------------------
# Multi-head attention core: one grid step per batch element, all heads in VMEM
# ----------------------------------------------------------------------------
def _mha_kernel(q_ref, k_ref, v_ref, o_ref, *, nhead, scale):
    q = q_ref[0]                                   # (Sq, C) bf16
    k = k_ref[0]                                   # (Sk, C)
    v = v_ref[0]                                   # (Sk, C)
    C = q.shape[-1]
    Dh = C // nhead
    for h in range(nhead):                         # static unroll: head split never leaves VMEM
        sl = slice(h * Dh, (h + 1) * Dh)
        qh, kh, vh = q[:, sl], k[:, sl], v[:, sl]
        # contract on Dh directly -> no materialized k.T; Sk lands on the lane axis
        s = jax.lax.dot_general(qh, kh, (((1,), (1,)), ((), ())),
                                preferred_element_type=jnp.float32) * scale
        s = s - jnp.max(s, axis=-1, keepdims=True)          # fp32 softmax stats
        p = jnp.exp(s)
        p = p * pl.reciprocal(jnp.sum(p, axis=-1, keepdims=True), approx=True)
        oh = jnp.dot(p.astype(vh.dtype), vh, preferred_element_type=jnp.float32)
        o_ref[0, :, sl] = oh.astype(o_ref.dtype)   # heads merged in-kernel into (Sq, C) slab


def pallas_attention(q, k, v, nhead, scale):
    """q:(N,Sq,C) k,v:(N,Sk,C) -> (N,Sq,C). Grid over batch; heads handled inside the kernel."""
    N, Sq, C = q.shape
    Sk = k.shape[1]
    q = q.astype(MXU_DTYPE)
    k = k.astype(MXU_DTYPE)
    v = v.astype(MXU_DTYPE)
    cost = pl.CostEstimate(
        flops=4 * N * Sq * Sk * C,
        transcendentals=N * nhead * Sq * Sk,
        bytes_accessed=2 * (N * Sq * C + 2 * N * Sk * C) + 4 * N * Sq * C)
    return pl.pallas_call(
        partial(_mha_kernel, nhead=nhead, scale=scale),
        grid=(N,),
        out_shape=jax.ShapeDtypeStruct((N, Sq, C), jnp.float32),
        in_specs=[pl.BlockSpec((1, Sq, C), lambda n: (n, 0, 0)),
                  pl.BlockSpec((1, Sk, C), lambda n: (n, 0, 0)),
                  pl.BlockSpec((1, Sk, C), lambda n: (n, 0, 0))],
        out_specs=pl.BlockSpec((1, Sq, C), lambda n: (n, 0, 0)),
        compiler_params=pltpu.CompilerParams(
            dimension_semantics=("parallel",),
            vmem_limit_bytes=VMEM_LIMIT_BYTES),
        cost_estimate=cost,
    )(q, k, v)


# ----------------------------------------------------------------------------
# Fused (residual add +) LayerNorm, row-tiled
# ----------------------------------------------------------------------------
def _layernorm_kernel(*refs, eps, has_residual):
    if has_residual:
        x_ref, r_ref, g_ref, b_ref, o_ref = refs
        x = x_ref[...].astype(jnp.float32) + r_ref[...].astype(jnp.float32)
    else:
        x_ref, g_ref, b_ref, o_ref = refs
        x = x_ref[...].astype(jnp.float32)
    mu = jnp.mean(x, axis=-1, keepdims=True)
    var = jnp.mean(jnp.square(x - mu), axis=-1, keepdims=True)
    y = (x - mu) * jax.lax.rsqrt(var + eps)
    o_ref[...] = (y * g_ref[...] + b_ref[...]).astype(o_ref.dtype)


def pallas_layer_norm(x, gamma, beta, residual=None, eps=1e-5):
    """LayerNorm(x [+ residual]) over last dim."""
    shp = x.shape
    C = shp[-1]
    x2 = x.reshape(-1, C).astype(jnp.float32)
    M = x2.shape[0]
    tm = _pick_tile(M, (1024, 512, 256, 128, 8), 1024)
    in_specs = [pl.BlockSpec((tm, C), lambda i: (i, 0))]
    args = [x2]
    if residual is not None:
        in_specs.append(pl.BlockSpec((tm, C), lambda i: (i, 0)))
        args.append(residual.reshape(-1, C).astype(jnp.float32))
    in_specs += [pl.BlockSpec((1, C), lambda i: (0, 0)),
                 pl.BlockSpec((1, C), lambda i: (0, 0))]
    args += [gamma.reshape(1, C).astype(jnp.float32),
             beta.reshape(1, C).astype(jnp.float32)]
    out = pl.pallas_call(
        partial(_layernorm_kernel, eps=eps, has_residual=residual is not None),
        grid=(M // tm,),
        out_shape=jax.ShapeDtypeStruct((M, C), jnp.float32),
        in_specs=in_specs,
        out_specs=pl.BlockSpec((tm, C), lambda i: (i, 0)),
        compiler_params=pltpu.CompilerParams(
            dimension_semantics=("parallel",),
            vmem_limit_bytes=VMEM_LIMIT_BYTES),
    )(*args)
    return out.reshape(shp)


# ----------------------------------------------------------------------------
# PReLU (single learned alpha, nn.PReLU default), row-tiled
# ----------------------------------------------------------------------------
def _prelu_kernel(x_ref, a_ref, o_ref):
    x = x_ref[...].astype(jnp.float32)
    a = a_ref[...]
    o_ref[...] = jnp.where(x >= 0.0, x, a * x).astype(o_ref.dtype)


def pallas_prelu(x, alpha):
    shp = x.shape
    C = shp[-1]
    x2 = x.reshape(-1, C).astype(jnp.float32)
    M = x2.shape[0]
    tm = _pick_tile(M, (1024, 512, 256, 128, 8), 1024)
    out = pl.pallas_call(
        _prelu_kernel,
        grid=(M // tm,),
        out_shape=jax.ShapeDtypeStruct((M, C), jnp.float32),
        in_specs=[pl.BlockSpec((tm, C), lambda i: (i, 0)),
                  pl.BlockSpec((1, 1), lambda i: (0, 0))],
        out_specs=pl.BlockSpec((tm, C), lambda i: (i, 0)),
        compiler_params=pltpu.CompilerParams(
            dimension_semantics=("parallel",),
            vmem_limit_bytes=VMEM_LIMIT_BYTES),
    )(x2, alpha.astype(jnp.float32))
    return out.reshape(shp)


# ----------------------------------------------------------------------------
# Model building blocks (batch-first layout: (N, S, C))
# ----------------------------------------------------------------------------
def multihead_attention(query, key, value, p, nhead):
    """Batch-first MHA with nn.MultiheadAttention semantics.  query:(N,Sq,C) key/value:(N,Sk,C)."""
    N, Sq, C = query.shape
    Sk = key.shape[1]

    if query is key and key is value:
        # single fused QKV projection
        w = jnp.concatenate([p["w_q"], p["w_k"], p["w_v"]], axis=0).T      # (C, 3C)
        b = jnp.concatenate([p["b_q"], p["b_k"], p["b_v"]], axis=0)
        qkv = pallas_matmul(query.reshape(N * Sq, C), w, b, out_dtype=MXU_DTYPE)
        q, k, v = qkv[:, :C], qkv[:, C:2 * C], qkv[:, 2 * C:]
    elif query is key:
        # self-attention: q/k share the (src+pos) input, v uses src  -> fused QK projection
        w = jnp.concatenate([p["w_q"], p["w_k"]], axis=0).T                # (C, 2C)
        b = jnp.concatenate([p["b_q"], p["b_k"]], axis=0)
        qk = pallas_matmul(query.reshape(N * Sq, C), w, b, out_dtype=MXU_DTYPE)
        q, k = qk[:, :C], qk[:, C:]
        v = pallas_matmul(value.reshape(N * Sk, C), p["w_v"].T, p["b_v"], out_dtype=MXU_DTYPE)
    else:
        q = pallas_matmul(query.reshape(N * Sq, C), p["w_q"].T, p["b_q"], out_dtype=MXU_DTYPE)
        k = pallas_matmul(key.reshape(N * Sk, C), p["w_k"].T, p["b_k"], out_dtype=MXU_DTYPE)
        v = pallas_matmul(value.reshape(N * Sk, C), p["w_v"].T, p["b_v"], out_dtype=MXU_DTYPE)

    q = q.reshape(N, Sq, C)
    k = k.reshape(N, Sk, C)
    v = v.reshape(N, Sk, C)
    oh = pallas_attention(q, k, v, nhead, 1.0 / math.sqrt(C // nhead))
    out = pallas_matmul(oh.reshape(N * Sq, C), p["w_o"].T, p["b_o"])
    return out.reshape(N, Sq, C)


def ffn(x, p):
    N, S, C = x.shape
    h = pallas_matmul(x.reshape(N * S, C), p["lin1_w"].T, p["lin1_b"],
                      activation="relu", out_dtype=MXU_DTYPE)     # bias+ReLU fused epilogue
    h = pallas_matmul(h, p["lin2_w"].T, p["lin2_b"])
    return h.reshape(N, S, C)


def encoder_layer(src, pos, p, nhead):
    q = src + pos
    attn = multihead_attention(q, q, src, p["self_attn"], nhead)
    src = pallas_layer_norm(attn, p["norm1"]["g"], p["norm1"]["b"], residual=src)
    src = pallas_layer_norm(ffn(src, p), p["norm2"]["g"], p["norm2"]["b"], residual=src)
    return src


def decoder_layer(tgt, memory, pos, query_pos, p, nhead):
    q = tgt + query_pos
    attn = multihead_attention(q, q, tgt, p["self_attn"], nhead)
    tgt = pallas_layer_norm(attn, p["norm1"]["g"], p["norm1"]["b"], residual=tgt)
    attn2 = multihead_attention(tgt + query_pos, memory + pos, memory,
                                p["cross_attn"], nhead)
    tgt = pallas_layer_norm(attn2, p["norm2"]["g"], p["norm2"]["b"], residual=tgt)
    tgt = pallas_layer_norm(ffn(tgt, p), p["norm3"]["g"], p["norm3"]["b"], residual=tgt)
    return tgt


def pca_fit_transform(X, n_components):
    """sklearn-style PCA.fit_transform on X:(samples, features)."""
    mean = jnp.mean(X, axis=0, keepdims=True)
    Xc = X - mean
    n = X.shape[0]
    cov = pallas_matmul(Xc.T, Xc) / jnp.float32(max(n - 1, 1))
    # TODO(synk): symmetric eigendecomposition has no Pallas equivalent; done in plain JAX (XLA).
    _, evecs = jnp.linalg.eigh(cov)                 # ascending eigenvalues
    comps = evecs[:, ::-1][:, :n_components]        # top-k principal axes (F, d_model)
    return pallas_matmul(Xc, comps)


def sinusoidal_pe(max_len, d_model):
    pos = jnp.arange(max_len, dtype=jnp.float32)[:, None]
    div = jnp.exp(jnp.arange(0, d_model, 2, dtype=jnp.float32)
                  * (-math.log(10000.0) / d_model))
    pe = jnp.zeros((max_len, d_model), jnp.float32)
    pe = pe.at[:, 0::2].set(jnp.sin(pos * div))
    pe = pe.at[:, 1::2].set(jnp.cos(pos * div))
    return pe


# ----------------------------------------------------------------------------
# TPInterpreter forward (batch-first internally; same math as the seq-first module)
# ----------------------------------------------------------------------------
def tp_interpreter_forward(params, image_feature, tp_input, *, nhead=4):
    d_model = params["d_model"]
    N_i, C_i, H_i, W_i = image_feature.shape
    H, W = H_i, W_i

    # x_im = image_feature.view(N,C,H*W).permute(2,0,1)  (seq-first)  ==  (N, H*W, C) batch-first
    x_im = jnp.transpose(image_feature.reshape(N_i, C_i, H_i * W_i), (0, 2, 1))

    # x = tp_input.permute(0,3,1,2).squeeze(-1) -> (N, L, t_emb)
    x = jnp.squeeze(jnp.transpose(tp_input, (0, 3, 1, 2)), axis=-1)
    N, L, E = x.shape

    # PCA fit_transform over the (N*L, t_emb) token matrix, then PReLU
    X_pca = pca_fit_transform(x.reshape(N * L, E), d_model).reshape(N, L, d_model)
    x = pallas_prelu(X_pca, params["prelu_alpha"])                     # (N, L, C)

    # x_pos = PE(zeros(N,L,C))  (dropout = identity), kept batch-first (N, L, C)
    x_pos = jnp.broadcast_to(params["pe_table"][:L][None, :, :], (N, L, d_model))

    # --- InfoTransformer (DETR-style, post-norm, return_intermediate_dec=True) ---
    memory = x
    for lp in params["encoder"]:
        memory = encoder_layer(memory, x_pos, lp, nhead)

    query_pos = jnp.broadcast_to(params["init_factor"][None, :, :], (N, H * W, d_model))
    tgt = x_im
    intermediates = []
    for lp in params["decoder"]:
        tgt = decoder_layer(tgt, memory, x_pos, query_pos, lp, nhead)
        intermediates.append(
            pallas_layer_norm(tgt, params["dec_norm_g"], params["dec_norm_b"]))
    text_prior = jnp.mean(jnp.stack(intermediates, axis=0), axis=0)    # (N, H*W, C)

    # == permute(1,2,0).view(N,C,H,W) of the seq-first result
    text_prior = jnp.transpose(text_prior, (0, 2, 1)).reshape(N_i, d_model, H, W)
    return text_prior


# ----------------------------------------------------------------------------
# Deterministic parameter init (shapes taken from the module's __init__)
# ----------------------------------------------------------------------------
def init_params(key, *, d_model, t_emb, dim_ff, seq_len, n_enc, n_dec, max_len=7937):
    keys = iter(jax.random.split(key, 256))

    def w(shape, scale=0.02):
        return scale * jax.random.normal(next(keys), shape, jnp.float32)

    def mha():
        return dict(
            w_q=w((d_model, d_model)), b_q=jnp.zeros((d_model,), jnp.float32),
            w_k=w((d_model, d_model)), b_k=jnp.zeros((d_model,), jnp.float32),
            w_v=w((d_model, d_model)), b_v=jnp.zeros((d_model,), jnp.float32),
            w_o=w((d_model, d_model)), b_o=jnp.zeros((d_model,), jnp.float32))

    def ln():
        return dict(g=jnp.ones((d_model,), jnp.float32),
                    b=jnp.zeros((d_model,), jnp.float32))

    def enc_layer():
        return dict(self_attn=mha(),
                    lin1_w=w((dim_ff, d_model)), lin1_b=jnp.zeros((dim_ff,), jnp.float32),
                    lin2_w=w((d_model, dim_ff)), lin2_b=jnp.zeros((d_model,), jnp.float32),
                    norm1=ln(), norm2=ln())

    def dec_layer():
        return dict(self_attn=mha(), cross_attn=mha(),
                    lin1_w=w((dim_ff, d_model)), lin1_b=jnp.zeros((dim_ff,), jnp.float32),
                    lin2_w=w((d_model, dim_ff)), lin2_b=jnp.zeros((d_model,), jnp.float32),
                    norm1=ln(), norm2=ln(), norm3=ln())

    return dict(
        d_model=d_model,
        fc_in_w=w((d_model, t_emb)),                          # defined in __init__, unused in forward
        fc_in_b=jnp.zeros((d_model,), jnp.float32),
        prelu_alpha=jnp.full((1, 1), 0.25, jnp.float32),      # nn.PReLU default
        pe_table=sinusoidal_pe(max_len, d_model),
        init_factor=w((seq_len, d_model), scale=1.0),         # nn.Embedding default ~ N(0,1)
        encoder=[enc_layer() for _ in range(n_enc)],
        decoder=[dec_layer() for _ in range(n_dec)],
        dec_norm_g=jnp.ones((d_model,), jnp.float32),
        dec_norm_b=jnp.zeros((d_model,), jnp.float32),
    )


# ----------------------------------------------------------------------------
if __name__ == "__main__":
    key = jax.random.PRNGKey(0)
    k_par, k_img, k_tp = jax.random.split(key, 3)

    # Small shapes consistent with the forward:
    #   d_model == out_text_channels == image-feature channels
    #   output_size = (H, W), seq_len = H*W, tp_input length L, t_emb input embedding dim
    N, d_model, t_emb = 2, 32, 64
    H, W = 4, 8
    L = 32
    nhead, n_enc, n_dec = 4, 1, 2

    params = init_params(k_par, d_model=d_model, t_emb=t_emb, dim_ff=d_model,
                         seq_len=H * W, n_enc=n_enc, n_dec=n_dec)

    image_feature = jax.random.normal(k_img, (N, d_model, H, W), jnp.float32)
    tp_input = jax.random.normal(k_tp, (N, t_emb, 1, L), jnp.float32)

    out = tp_interpreter_forward(params, image_feature, tp_input, nhead=nhead)
    out = jax.block_until_ready(out)
    assert out.shape == (N, d_model, H, W), out.shape
    assert jnp.all(jnp.isfinite(out))
    print("KERNEL_OK")
</pallas_src>

<mosaic_0001>
module attributes {stable_mosaic.version = 11 : i64} {
  func.func @_matmul_kernel(%arg0: i32, %arg1: i32, %arg2: i32, %arg3: memref<64x64xbf16, #tpu.memory_space<vmem>>, %arg4: memref<64x64xbf16, #tpu.memory_space<vmem>>, %arg5: memref<64x64xf32, #tpu.memory_space<vmem>>, %arg6: memref<64x64xf32, #tpu.memory_space<vmem>>) attributes {dimension_semantics = [#tpu.dimension_semantics<parallel>, #tpu.dimension_semantics<parallel>, #tpu.dimension_semantics<arbitrary>], iteration_bounds = array<i64: 1, 1, 1>, scalar_prefetch = 0 : i64, scratch_operands = 1 : i64, tpu.core_type = #tpu.core_type<tc>, window_params = [{transform_indices = @transform_0, window_bounds = array<i64: 64, 64>}, {transform_indices = @transform_1, window_bounds = array<i64: 64, 64>}, {transform_indices = @transform_2, window_bounds = array<i64: 64, 64>}]} {
    %c0_i32 = arith.constant 0 : i32
    %0 = arith.cmpi eq, %arg2, %c0_i32 : i32
    %1 = arith.extui %0 : i1 to i32
    %c0_i32_0 = arith.constant 0 : i32
    %2 = arith.cmpi ne, %1, %c0_i32_0 : i32
    scf.if %2 {
      %cst_10 = arith.constant 0.000000e+00 : f32
      %12 = vector.broadcast %cst_10 : f32 to vector<64x64xf32>
      %c0_11 = arith.constant 0 : index
      %c0_12 = arith.constant 0 : index
      %13 = vector.load %arg6[%c0_11, %c0_12] : memref<64x64xf32, #tpu.memory_space<vmem>>, vector<64x64xf32>
      tpu.vector_store %arg6[%c0_11, %c0_12], %12 {strides = array<i32>} : memref<64x64xf32, #tpu.memory_space<vmem>>, vector<64x64xf32>,
    } else {
    }
    %c0 = arith.constant 0 : index
    %c0_1 = arith.constant 0 : index
    %3 = vector.load %arg6[%c0, %c0_1] : memref<64x64xf32, #tpu.memory_space<vmem>>, vector<64x64xf32>
    %c0_2 = arith.constant 0 : index
    %c0_3 = arith.constant 0 : index
    %4 = vector.load %arg3[%c0_2, %c0_3] : memref<64x64xbf16, #tpu.memory_space<vmem>>, vector<64x64xbf16>
    %c0_4 = arith.constant 0 : index
    %c0_5 = arith.constant 0 : index
    %5 = vector.load %arg4[%c0_4, %c0_5] : memref<64x64xbf16, #tpu.memory_space<vmem>>, vector<64x64xbf16>
    %cst = arith.constant dense<0.000000e+00> : vector<64x64xf32>
    %6 = tpu.matmul %4, %5, %cst {dimension_numbers = #tpu.dot_dimension_numbers<[1], [0], [0], [1], [0, 0, 1, 1], [], []>} : vector<64x64xbf16>, vector<64x64xbf16>, vector<64x64xf32> -> vector<64x64xf32>
    %7 = arith.addf %3, %6 : vector<64x64xf32>
    %c0_6 = arith.constant 0 : index
    %c0_7 = arith.constant 0 : index
    %8 = vector.load %arg6[%c0_6, %c0_7] : memref<64x64xf32, #tpu.memory_space<vmem>>, vector<64x64xf32>
    tpu.vector_store %arg6[%c0_6, %c0_7], %7 {strides = array<i32>} : memref<64x64xf32, #tpu.memory_space<vmem>>, vector<64x64xf32>,
    %c0_i32_8 = arith.constant 0 : i32
    %9 = arith.cmpi eq, %arg2, %c0_i32_8 : i32
    %10 = arith.extui %9 : i1 to i32
    %c0_i32_9 = arith.constant 0 : i32
    %11 = arith.cmpi ne, %10, %c0_i32_9 : i32
    scf.if %11 {
      %c0_10 = arith.constant 0 : index
      %c0_11 = arith.constant 0 : index
      %12 = vector.load %arg6[%c0_10, %c0_11] : memref<64x64xf32, #tpu.memory_space<vmem>>, vector<64x64xf32>
      %c0_12 = arith.constant 0 : index
      %c0_13 = arith.constant 0 : index
      %13 = vector.load %arg5[%c0_12, %c0_13] : memref<64x64xf32, #tpu.memory_space<vmem>>, vector<64x64xf32>
      tpu.vector_store %arg5[%c0_12, %c0_13], %12 {strides = array<i32>} : memref<64x64xf32, #tpu.memory_space<vmem>>, vector<64x64xf32>,
    } else {
    }
    return
  }
  func.func @transform_0(%arg0: i32, %arg1: i32, %arg2: i32) -> (i32, i32) {
    %c0_i32 = arith.constant 0 : i32
    return %arg0, %arg2 : i32, i32
  }
  func.func @transform_1(%arg0: i32, %arg1: i32, %arg2: i32) -> (i32, i32) {
    %c0_i32 = arith.constant 0 : i32
    return %arg2, %arg1 : i32, i32
  }
  func.func @transform_2(%arg0: i32, %arg1: i32, %arg2: i32) -> (i32, i32) {
    %c0_i32 = arith.constant 0 : i32
    return %arg0, %arg1 : i32, i32
  }
}

</mosaic_0001>

<llo_original>
// kernel: tpu_custom_call.1
$region0: #{tpu_custom_call.1}
  #allocation0 [shape = 'u32[]', space=smem, size = 0x4, offset = 0x4, fixed_abs, tag = 'smem constant byte address 0x4 - core index']
  #allocation1 [shape = 'u32[144,128]{1,0:T(1,128)}', space=vmem, size = 0x12000, scoped, tag = 'internal scratch']
  #allocation2 [shape = 'f32[64,64]{1,0:T(8,128)}', space=vmem, size = 0x8000, scoped, tag = 'scratch operand']
  %s0 = inlined_call_operand.hbm [shape: bf16[64,64], index: 0, kind: input, shape index: {}]
  %s1 = inlined_call_operand.hbm [shape: bf16[64,64], index: 1, kind: input, shape index: {}]
  %s2 = inlined_call_operand.hbm [shape: f32[64,64], index: 2, kind: output, shape index: {}]
  %s3 = sld [smem:[#allocation0]]
  $region34: #{tpu_custom_call.1} parent=0
    _
  %s5 = ssub.s32 1, %s3
  %s6 = scalar_select 0, %s5, %s3
  $region1: #{tpu_custom_call.1} parent=0
    #allocation3 [shape = 'u8[16384]{0}', space=vmem, size = 0x4000, scoped, tag = 'input window, operand 0, single buffered']
    #allocation4 [shape = 's32[1]{0}', space=sflag, size = 0x4, scoped, tag = 'scoped memory for tpu_custom_call.1']
    #allocation5 [shape = 's32[1]{0}', space=sflag, size = 0x4, scoped, tag = 'scoped memory for tpu_custom_call.1']
    #allocation6 [shape = 'u8[16384]{0}', space=vmem, size = 0x4000, scoped, tag = 'input window, operand 1, single buffered']
    #allocation7 [shape = 's32[1]{0}', space=sflag, size = 0x4, scoped, tag = 'scoped memory for tpu_custom_call.1']
    #allocation8 [shape = 'u8[32768]{0}', space=vmem, size = 0x8000, scoped, tag = 'output window, operand 0, single buffered']
    %7 = vsyncpa [#allocation4], 0
    %8 = vsyncpa [#allocation7], 0
    %9 = vsyncpa [#allocation5], 0
    // Predicated region
    $region2: #{tpu_custom_call.1} parent=1 // pred_check
      _
    $region3: #{tpu_custom_call.1} parent=1 // pred_check_branch
      %11 = sbr.rel (0) target = $region5
    $region4: #{tpu_custom_call.1} parent=1 // pred_region
      %s13 = ssub.s32 512, 512
      %14 = vsyncadd [#allocation4], %s13
      %s15 = sshll.u32 [#allocation3], 4
      %s16 = int_to_ptr.vmem [resolvable:$true] %s15
      %21 = dma.hbm_to_vmem [thread:$0]  %s0, 512, %s16, [#allocation4], 64, 64, 4
    $region5: #{tpu_custom_call.1} parent=1 // pred_fallthru
      _
    // Predicated region
    $region6: #{tpu_custom_call.1} parent=1 // pred_check
      _
    $region7: #{tpu_custom_call.1} parent=1 // pred_check_branch
      %23 = sbr.rel (0) target = $region9
    $region8: #{tpu_custom_call.1} parent=1 // pred_region
      %s25 = ssub.s32 512, 512
      %26 = vsyncadd [#allocation7], %s25
      %s27 = sshll.u32 [#allocation6], 4
      %s28 = int_to_ptr.vmem [resolvable:$true] %s27
      %33 = dma.hbm_to_vmem [thread:$0]  %s1, 512, %s28, [#allocation7], 64, 64, 4
    $region9: #{tpu_custom_call.1} parent=1 // pred_fallthru
      _
    // Predicated region
    $region10: #{tpu_custom_call.1} parent=1 // pred_check
      _
    $region11: #{tpu_custom_call.1} parent=1 // pred_check_branch
      %35 = sbr.rel (0) target = $region13
    $region12: #{tpu_custom_call.1} parent=1 // pred_region
      %36 = dma.done [#allocation4], 512
    $region13: #{tpu_custom_call.1} parent=1 // pred_fallthru
      _
    // Predicated region
    $region14: #{tpu_custom_call.1} parent=1 // pred_check
      _
    $region15: #{tpu_custom_call.1} parent=1 // pred_check_branch
      %38 = sbr.rel (0) target = $region17
    $region16: #{tpu_custom_call.1} parent=1 // pred_region
      %39 = dma.done [#allocation7], 512
    $region17: #{tpu_custom_call.1} parent=1 // pred_fallthru
      _
    %p41 = scmp.eq.s32.totalorder 0, 0
    // Predicated region
    $region18: #{tpu_custom_call.1} parent=1 // pred_check
      %p42 = pneg %p41
    $region19: #{tpu_custom_call.1} parent=1 // pred_check_branch
      %44 = sbr.rel (%p42) target = $region21
    $region20: #{tpu_custom_call.1} parent=1 // pred_region
      %vm45 = vcmask 523264
      %46 = vst.msk [vmem:[#allocation2] sm:$0xff] %vm45, 0.0
      %47 = vst.msk [vmem:[#allocation2 + $0x8] sm:$0xff] %vm45, 0.0
      %48 = vst.msk [vmem:[#allocation2 + $0x10] sm:$0xff] %vm45, 0.0
      %49 = vst.msk [vmem:[#allocation2 + $0x18] sm:$0xff] %vm45, 0.0
      %50 = vst.msk [vmem:[#allocation2 + $0x20] sm:$0xff] %vm45, 0.0
      %51 = vst.msk [vmem:[#allocation2 + $0x28] sm:$0xff] %vm45, 0.0
      %52 = vst.msk [vmem:[#allocation2 + $0x30] sm:$0xff] %vm45, 0.0
      %53 = vst.msk [vmem:[#allocation2 + $0x38] sm:$0xff] %vm45, 0.0
    $region21: #{tpu_custom_call.1} parent=1 // pred_fallthru
      _
    %v54 = vld [vmem:[#allocation2] sm:$0xff]
    %v55 = vld [vmem:[#allocation2 + $0x8] sm:$0xff]
    %v56 = vld [vmem:[#allocation2 + $0x10] sm:$0xff]
    %v57 = vld [vmem:[#allocation2 + $0x18] sm:$0xff]
    %v58 = vld [vmem:[#allocation2 + $0x20] sm:$0xff]
    %v59 = vld [vmem:[#allocation2 + $0x28] sm:$0xff]
    %v60 = vld [vmem:[#allocation2 + $0x30] sm:$0xff]
    %v61 = vld [vmem:[#allocation2 + $0x38] sm:$0xff]
    %v62 = vld [vmem:[#allocation3] sm:$0xf]
    %v63 = vld [vmem:[#allocation3 + $0x4] sm:$0xf]
    %v64 = vld [vmem:[#allocation3 + $0x8] sm:$0xf]
    %v65 = vld [vmem:[#allocation3 + $0xc] sm:$0xf]
    %v66 = vld [vmem:[#allocation3 + $0x10] sm:$0xf]
    %v67 = vld [vmem:[#allocation3 + $0x14] sm:$0xf]
    %v68 = vld [vmem:[#allocation3 + $0x18] sm:$0xf]
    %v69 = vld [vmem:[#allocation3 + $0x1c] sm:$0xf]
    %v70 = vld [vmem:[#allocation6] sm:$0xf]
    %v71 = vld [vmem:[#allocation6 + $0x4] sm:$0xf]
    %v72 = vld [vmem:[#allocation6 + $0x8] sm:$0xf]
    %v73 = vld [vmem:[#allocation6 + $0xc] sm:$0xf]
    %v74 = vld [vmem:[#allocation6 + $0x10] sm:$0xf]
    %v75 = vld [vmem:[#allocation6 + $0x14] sm:$0xf]
    %v76 = vld [vmem:[#allocation6 + $0x18] sm:$0xf]
    %v77 = vld [vmem:[#allocation6 + $0x1c] sm:$0xf]
    %v86 = vunpack.c.l.b16 %v62
    %v87 = vunpack.c.l.b16 %v63
    %v88 = vunpack.c.l.b16 %v64
    %v89 = vunpack.c.l.b16 %v65
    %v90 = vunpack.c.l.b16 %v66
    %v91 = vunpack.c.l.b16 %v67
    %v92 = vunpack.c.l.b16 %v68
    %v93 = vunpack.c.l.b16 %v69
    %v94 = vpack.c.b16 %v87, %v86
    %v95 = vpack.c.b16 %v89, %v88
    %v96 = vpack.c.b16 %v91, %v90
    %v97 = vpack.c.b16 %v93, %v92
    %v106 = vunpack.c.l.b16 %v70
    %v107 = vunpack.c.l.b16 %v71
    %v108 = vunpack.c.l.b16 %v72
    %v109 = vunpack.c.l.b16 %v73
    %v110 = vunpack.c.l.b16 %v74
    %v111 = vunpack.c.l.b16 %v75
    %v112 = vunpack.c.l.b16 %v76
    %v113 = vunpack.c.l.b16 %v77
    %v114 = vpack.c.b16 %v107, %v106
    %v115 = vpack.c.b16 %v109, %v108
    %v116 = vpack.c.b16 %v111, %v110
    %v117 = vpack.c.b16 %v113, %v112
    %vm122 = vcmask 523264
    %v124 = vsel %vm122, %v94, 0
    %v127 = vsel %vm122, %v95, 0
    %v130 = vsel %vm122, %v96, 0
    %v133 = vsel %vm122, %v97, 0
    %135 = vmatprep.subr.bf16.mxu0 0
    %136 = vmatpush1.bf16.msra.mxu0 0
    %137 = vmatprep.subr.bf16.mxu0 0
    %138 = vmatpush1.bf16.msra.mxu0 0
    %139 = vmatprep.subr.bf16.mxu0 0
    %140 = vmatpush1.bf16.msra.mxu0 0
    %141 = vmatprep.subr.bf16.mxu0 0
    %142 = vmatpush1.bf16.msra.mxu0 0
    %143 = vmatprep.subr.bf16.mxu0 0
    %144 = vmatpush1.bf16.msra.mxu0 %v117
    %145 = vmatprep.subr.bf16.mxu0 0
    %146 = vmatpush1.bf16.msra.mxu0 %v116
    %147 = vmatprep.subr.bf16.mxu0 0
    %148 = vmatpush1.bf16.msra.mxu0 %v115
    %149 = vmatprep.subr.bf16.mxu0 0
    %150 = vmatpush1.bf16.msra.mxu0 %v114
    %151 = vmatprep.subr.bf16.mxu0 0
    %152 = vmatpush2.bf16.msra.mxu0 0
    %153 = vmatprep.subr.bf16.mxu0 0
    %154 = vmatpush2.bf16.msra.mxu0 0
    %155 = vmatprep.subr.bf16.mxu0 0
    %156 = vmatpush2.bf16.msra.mxu0 0
    %157 = vmatprep.subr.bf16.mxu0 0
    %158 = vmatpush2.bf16.msra.mxu0 0
    %159 = vmatprep.subr.bf16.mxu0 0
    %160 = vmatpush2.bf16.msra.mxu0 0
    %161 = vmatprep.subr.bf16.mxu0 0
    %162 = vmatpush2.bf16.msra.mxu0 0
    %163 = vmatprep.subr.bf16.mxu0 0
    %164 = vmatpush2.bf16.msra.mxu0 0
    %165 = vmatprep.subr.bf16.mxu0 0
    %166 = vmatpush2.bf16.msra.mxu0 0
    %167 = vmatprep.mubr.bf16.mxu0 0
    %168 = vmatmul.mubr.bf16.gmra.mxu0 %v124
    %v169 = vpop.f32.mrf.mxu0
    %v170 = vadd.f32 0.0, %v169
    %v171 = vpop.f32.mrf.mxu0
    %v172 = vpop.f32.mrf.mxu0
    %v173 = vadd.f32 0.0, %v172
    %v174 = vpop.f32.mrf.mxu0
    %175 = vmatprep.mubr.bf16.mxu0 0
    %176 = vmatmul.mubr.bf16.gmra.mxu0 %v127
    %v177 = vpop.f32.mrf.mxu0
    %v178 = vadd.f32 0.0, %v177
    %v179 = vpop.f32.mrf.mxu0
    %v180 = vpop.f32.mrf.mxu0
    %v181 = vadd.f32 0.0, %v180
    %v182 = vpop.f32.mrf.mxu0
    %183 = vmatprep.mubr.bf16.mxu0 0
    %184 = vmatmul.mubr.bf16.gmra.mxu0 %v130
    %v185 = vpop.f32.mrf.mxu0
    %v186 = vadd.f32 0.0, %v185
    %v187 = vpop.f32.mrf.mxu0
    %v188 = vpop.f32.mrf.mxu0
    %v189 = vadd.f32 0.0, %v188
    %v190 = vpop.f32.mrf.mxu0
    %191 = vmatprep.mubr.bf16.mxu0 0
    %192 = vmatmul.mubr.bf16.gmra.mxu0 %v133
    %v193 = vpop.f32.mrf.mxu0
    %v194 = vadd.f32 0.0, %v193
    %v195 = vpop.f32.mrf.mxu0
    %v196 = vpop.f32.mrf.mxu0
    %v197 = vadd.f32 0.0, %v196
    %v198 = vpop.f32.mrf.mxu0
    %199 = vdwg.mxu0
    %v200 = vadd.f32 %v54, %v170
    %v201 = vadd.f32 %v55, %v173
    %v202 = vadd.f32 %v56, %v178
    %v203 = vadd.f32 %v57, %v181
    %v204 = vadd.f32 %v58, %v186
    %v205 = vadd.f32 %v59, %v189
    %v206 = vadd.f32 %v60, %v194
    %v207 = vadd.f32 %v61, %v197
    %208 = vst.msk [vmem:[#allocation2] sm:$0xff] %vm122, %v200
    %209 = vst.msk [vmem:[#allocation2 + $0x8] sm:$0xff] %vm122, %v201
    %210 = vst.msk [vmem:[#allocation2 + $0x10] sm:$0xff] %vm122, %v202
    %211 = vst.msk [vmem:[#allocation2 + $0x18] sm:$0xff] %vm122, %v203
    %212 = vst.msk [vmem:[#allocation2 + $0x20] sm:$0xff] %vm122, %v204
    %213 = vst.msk [vmem:[#allocation2 + $0x28] sm:$0xff] %vm122, %v205
    %214 = vst.msk [vmem:[#allocation2 + $0x30] sm:$0xff] %vm122, %v206
    %215 = vst.msk [vmem:[#allocation2 + $0x38] sm:$0xff] %vm122, %v207
    // Predicated region
    $region22: #{tpu_custom_call.1} parent=1 // pred_check
      %p216 = pneg %p41
    $region23: #{tpu_custom_call.1} parent=1 // pred_check_branch
      %218 = sbr.rel (%p216) target = $region25
    $region24: #{tpu_custom_call.1} parent=1 // pred_region
      %v219 = vld [vmem:[#allocation2] sm:$0xff]
      %v220 = vld [vmem:[#allocation2 + $0x8] sm:$0xff]
      %v221 = vld [vmem:[#allocation2 + $0x10] sm:$0xff]
      %v222 = vld [vmem:[#allocation2 + $0x18] sm:$0xff]
      %v223 = vld [vmem:[#allocation2 + $0x20] sm:$0xff]
      %v224 = vld [vmem:[#allocation2 + $0x28] sm:$0xff]
      %v225 = vld [vmem:[#allocation2 + $0x30] sm:$0xff]
      %v226 = vld [vmem:[#allocation2 + $0x38] sm:$0xff]
      %227 = vst.msk [vmem:[#allocation8] sm:$0xff] %vm122, %v219
      %228 = vst.msk [vmem:[#allocation8 + $0x8] sm:$0xff] %vm122, %v220
      %229 = vst.msk [vmem:[#allocation8 + $0x10] sm:$0xff] %vm122, %v221
      %230 = vst.msk [vmem:[#allocation8 + $0x18] sm:$0xff] %vm122, %v222
      %231 = vst.msk [vmem:[#allocation8 + $0x20] sm:$0xff] %vm122, %v223
      %232 = vst.msk [vmem:[#allocation8 + $0x28] sm:$0xff] %vm122, %v224
      %233 = vst.msk [vmem:[#allocation8 + $0x30] sm:$0xff] %vm122, %v225
      %234 = vst.msk [vmem:[#allocation8 + $0x38] sm:$0xff] %vm122, %v226
    $region25: #{tpu_custom_call.1} parent=1 // pred_fallthru
      _
    // Predicated region
    $region26: #{tpu_custom_call.1} parent=1 // pred_check
      _
    $region27: #{tpu_custom_call.1} parent=1 // pred_check_branch
      %236 = sbr.rel (0) target = $region29
    $region28: #{tpu_custom_call.1} parent=1 // pred_region
      %s238 = ssub.s32 1024, 1024
      %239 = vsyncadd [#allocation5], %s238
      %s240 = sshll.u32 [#allocation8], 4
      %s241 = int_to_ptr.vmem [resolvable:$true] %s240
      %246 = dma.vmem_to_hbm [thread:$0]  %s241, 1024, %s2, [#allocation5], 128, 128, 8
    $region29: #{tpu_custom_call.1} parent=1 // pred_fallthru
      _
    // Predicated region
    $region30: #{tpu_custom_call.1} parent=1 // pred_check
      _
    $region31: #{tpu_custom_call.1} parent=1 // pred_check_branch
      %248 = sbr.rel (0) target = $region33
    $region32: #{tpu_custom_call.1} parent=1 // pred_region
      %249 = dma.done [#allocation5], 1024
    $region33: #{tpu_custom_call.1} parent=1 // pred_fallthru
      _
    %250 = vsyncpa [#allocation4], 1
    %251 = vsyncpa [#allocation7], 1
    %252 = vsyncpa [#allocation5], 1

</llo_original>
